<compile_context>
chip_gen: v7x
topology: tpu7x:2x2x1
jax: 0.10.0
libtpu: 0.0.40
codegen_flags: <defaults>
</compile_context>

<pallas_src>
import functools

import jax
import jax.numpy as jnp
from jax.experimental import pallas as pl
from jax.experimental.pallas import tpu as pltpu


def _round_up(x, m):
    return ((x + m - 1) // m) * m


def _vmem_capacity_bytes():
    try:
        info = pltpu.get_tpu_info()
        cap = getattr(info, "vmem_capacity_bytes", None)
        if cap:
            return int(cap)
    except Exception:
        pass
    return 64 << 20   # conservative default: v7x per-TensorCore VMEM


def _sublane_multiple(dtype):
    # Native TPU tile is (8, 128) 32-bit words; narrower dtypes pack rows along
    # sublanes, so the row tile must be a multiple of 8 / 16 / 32.
    return max(8, 32 // jnp.dtype(dtype).itemsize)


def _pick_tile_n(n, c, itemsize, sublane, targets_resident):
    """Largest dtype-aligned row tile whose per-step VMEM footprint
    (2x double-buffered input tile + ~3 live f32 intermediates + small
    column blocks) fits a generation-aware VMEM budget."""
    budget = int(_vmem_capacity_bytes() * 0.55)
    if targets_resident:
        budget -= 2 * _round_up(n, 8) * 512        # resident (N,1) i32 block
    # VMEM bytes consumed per logits row at a given tile size:
    per_row = c * (2 * itemsize + 3 * 4) + 1024    # + (tile_n,1) f32 output
    if not targets_resident:
        per_row += 1024                            # + streamed (tile_n,1) tgt
    rows = max(sublane, budget // max(1, per_row))
    # Cap a single input buffer at 16 MiB — already amortizes the ~0.35us/step
    # grid overhead to well under 5% on all generations.
    rows = min(rows, max(sublane, (16 << 20) // max(1, c * itemsize)))
    rows = max(sublane, (rows // sublane) * sublane)
    if n >= sublane:
        rows = min(rows, (n // sublane) * sublane)
    return rows


def _ce_label_smooth_kernel(inputs_ref, targets_ref, out_ref, *,
                            num_classes, epsilon, n_total, tile_n,
                            targets_resident):
    i = pl.program_id(0)

    x = inputs_ref[...].astype(jnp.float32)                   # (tile_n, C)

    if targets_resident:
        row0 = pl.multiple_of(i * tile_n, 8)
        tgt = targets_ref[pl.ds(row0, tile_n), :]              # (tile_n, 1)
    else:
        tgt = targets_ref[...]                                  # (tile_n, 1)

    # Numerically stable log-softmax statistics (lane reductions only).
    m = jnp.max(x, axis=1, keepdims=True)                      # (tile_n, 1)
    shifted = x - m                                             # (tile_n, C)
    lse = jnp.log(jnp.sum(jnp.exp(shifted), axis=1, keepdims=True))

    # Fused weighted reduction: weights sum to 1 per row, so
    #   loss_i = lse_i - sum_j w_ij * shifted_ij
    eps = jnp.float32(epsilon)
    base = eps / jnp.float32(num_classes)
    class_ids = jax.lax.broadcasted_iota(jnp.int32, shifted.shape, 1)
    w = jnp.where(class_ids == tgt, base + (1.0 - eps), base)
    per_row = lse - jnp.sum(shifted * w, axis=1, keepdims=True)  # (tile_n, 1)

    # Zero rows past the true batch (last tile may be padded with garbage;
    # jnp.where does not propagate the unselected branch, so this is enough).
    row_ids = i * tile_n + jax.lax.broadcasted_iota(jnp.int32, (tile_n, 1), 0)
    per_row = jnp.where(row_ids < n_total, per_row, 0.0)

    out_ref[...] = per_row


def cross_entropy_label_smooth(inputs, targets, num_classes, epsilon=0.1,
                               tile_n=None):
    """Pallas TPU implementation of CrossEntropyLabelSmooth.forward.

    inputs:  (N, C) float32 or bfloat16 logits.
    targets: (N,)   integer class ids.
    Returns scalar f32 loss.
    """
    n, c = inputs.shape
    assert c == num_classes
    itemsize = jnp.dtype(inputs.dtype).itemsize
    sublane = _sublane_multiple(inputs.dtype)

    # Keep the whole (N,1) targets column resident in VMEM when small (a
    # (rows,1) int32 block costs ~512 B/row due to lane padding); otherwise
    # stream it per tile like the logits.
    targets_resident = 2 * _round_up(n, 8) * 512 <= (4 << 20)

    if tile_n is None:
        tile_n = _pick_tile_n(n, c, itemsize, sublane, targets_resident)
    assert tile_n % sublane == 0, (tile_n, sublane)

    num_tiles = pl.cdiv(n, tile_n)
    n_pad = num_tiles * tile_n

    # Pad targets so target reads are always in bounds (both layouts).
    targets_2d = jnp.pad(targets.astype(jnp.int32).reshape(n, 1),
                         ((0, n_pad - n), (0, 0)))
    # Only when the tile is larger than the whole batch (tiny N) pad the
    # logits too, so no block exceeds the array extent.
    if tile_n > n:
        inputs = jnp.pad(inputs, ((0, n_pad - n), (0, 0)))

    if targets_resident:
        tgt_spec = pl.BlockSpec((n_pad, 1), lambda i: (0, 0))
    else:
        tgt_spec = pl.BlockSpec((tile_n, 1), lambda i: (i, 0))

    kernel = functools.partial(
        _ce_label_smooth_kernel,
        num_classes=num_classes, epsilon=epsilon, n_total=n, tile_n=tile_n,
        targets_resident=targets_resident)

    # Explicit scoped-VMEM limit: double-buffered input tile, live f32
    # intermediates, targets block(s), output blocks, plus slack.
    in_tile = tile_n * c * itemsize
    f32_tile = tile_n * c * 4
    tgt_bytes = 2 * (n_pad if targets_resident else tile_n) * 512
    out_bytes = 2 * tile_n * 512
    vmem_needed = 2 * in_tile + 3 * f32_tile + tgt_bytes + out_bytes + (2 << 20)
    vmem_limit = int(min(_vmem_capacity_bytes(), max(vmem_needed, 32 << 20)))

    cost = pl.CostEstimate(
        flops=int(5 * n * c),
        transcendentals=int(n * c + n),
        bytes_accessed=int(n * c * itemsize + n_pad * 4 + n_pad * 4),
    )

    per_row_loss = pl.pallas_call(
        kernel,
        out_shape=jax.ShapeDtypeStruct((n_pad, 1), jnp.float32),
        grid=(num_tiles,),
        in_specs=[
            pl.BlockSpec((tile_n, c), lambda i: (i, 0)),   # logits tile
            tgt_spec,                                       # targets
        ],
        out_specs=pl.BlockSpec((tile_n, 1), lambda i: (i, 0)),
        compiler_params=pltpu.CompilerParams(
            dimension_semantics=("parallel",),              # megacore-friendly
            vmem_limit_bytes=vmem_limit),
        cost_estimate=cost,
    )(inputs, targets_2d)

    # Pairwise sum of partials + batch mean outside the kernel (padded rows
    # are exactly zero).
    return jnp.sum(per_row_loss) / jnp.float32(n)


def _reference(inputs, targets, num_classes, epsilon=0.1):
    log_probs = jax.nn.log_softmax(inputs.astype(jnp.float32), axis=1)
    onehot = jax.nn.one_hot(targets, num_classes, dtype=jnp.float32)
    smoothed = (1.0 - epsilon) * onehot + epsilon / num_classes
    return jnp.sum(jnp.mean(-smoothed * log_probs, axis=0))


if __name__ == "__main__":
    # Small deterministic example. batch=20 is deliberately NOT a multiple of
    # the tile (tile_n=8 -> 3 grid steps, last tile partially padded) so the
    # tiling + masking + per-tile-output path is exercised.
    num_classes = 32
    batch = 20
    epsilon = 0.1

    key = jax.random.PRNGKey(0)
    k_logits, k_labels = jax.random.split(key)
    inputs = jax.random.normal(k_logits, (batch, num_classes),
                               dtype=jnp.float32)
    targets = jax.random.randint(k_labels, (batch,), 0, num_classes,
                                 dtype=jnp.int32)

    loss = cross_entropy_label_smooth(inputs, targets, num_classes, epsilon,
                                      tile_n=8)
    loss = jax.block_until_ready(loss)

    ref = _reference(inputs, targets, num_classes, epsilon)
    assert jnp.allclose(loss, ref, rtol=1e-5, atol=1e-5), (loss, ref)

    # Also exercise the auto-tiled path (single tile, resident targets).
    loss2 = jax.block_until_ready(
        cross_entropy_label_smooth(inputs, targets, num_classes, epsilon))
    assert jnp.allclose(loss2, ref, rtol=1e-5, atol=1e-5), (loss2, ref)

    print("KERNEL_OK")
</pallas_src>

<mosaic_0001>
module attributes {stable_mosaic.version = 11 : i64} {
  func.func @_ce_label_smooth_kernel(%arg0: i32, %arg1: memref<8x32xf32, #tpu.memory_space<vmem>>, %arg2: memref<24x1xi32, #tpu.memory_space<vmem>>, %arg3: memref<8x1xf32, #tpu.memory_space<vmem>>) attributes {dimension_semantics = [#tpu.dimension_semantics<parallel>], iteration_bounds = array<i64: 3>, scalar_prefetch = 0 : i64, scratch_operands = 0 : i64, tpu.core_type = #tpu.core_type<tc>, window_params = [{transform_indices = @transform_0, window_bounds = array<i64: 8, 32>}, {pipeline_mode = #tpu.pipeline_mode<synchronous>, transform_indices = @transform_1, window_bounds = array<i64: 24, 1>}, {transform_indices = @transform_2, window_bounds = array<i64: 8, 1>}]} {
    %c0 = arith.constant 0 : index
    %c0_0 = arith.constant 0 : index
    %0 = vector.load %arg1[%c0, %c0_0] : memref<8x32xf32, #tpu.memory_space<vmem>>, vector<8x32xf32>
    %c8_i32 = arith.constant 8 : i32
    %1 = arith.muli %arg0, %c8_i32 : i32
    %2 = tpu.assume_multiple %1, 8 : i32
    %3 = arith.index_cast %2 : i32 to index
    %c0_1 = arith.constant 0 : index
    %4 = vector.load %arg2[%3, %c0_1] : memref<24x1xi32, #tpu.memory_space<vmem>>, vector<8x1xi32>
    %cst = arith.constant dense<0xFF800000> : vector<8xf32>
    %5 = vector.multi_reduction <maximumf>, %0, %cst [1] : vector<8x32xf32> to vector<8xf32>
    %6 = vector.shape_cast %5 : vector<8xf32> to vector<8x1xf32>
    %7 = vector.broadcast %6 : vector<8x1xf32> to vector<8x32xf32>
    %8 = arith.subf %0, %7 : vector<8x32xf32>
    %9 = math.exp %8 : vector<8x32xf32>
    %cst_2 = arith.constant dense<0.000000e+00> : vector<8xf32>
    %10 = vector.multi_reduction <add>, %9, %cst_2 [1] : vector<8x32xf32> to vector<8xf32>
    %11 = vector.shape_cast %10 : vector<8xf32> to vector<8x1xf32>
    %12 = math.log %11 : vector<8x1xf32>
    %cst_3 = arith.constant 1.000000e-01 : f32
    %cst_4 = arith.constant 3.200000e+01 : f32
    %13 = arith.divf %cst_3, %cst_4 : f32
    %14 = tpu.iota {dimensions = array<i32: 1>} : vector<8x32xi32>
    %15 = vector.broadcast %4 : vector<8x1xi32> to vector<8x32xi32>
    %16 = arith.cmpi eq, %14, %15 : vector<8x32xi32>
    %cst_5 = arith.constant 1.000000e+00 : f32
    %cst_6 = arith.constant 1.000000e-01 : f32
    %17 = arith.subf %cst_5, %cst_6 : f32
    %18 = arith.addf %13, %17 : f32
    %19 = vector.broadcast %18 : f32 to vector<8x32xf32>
    %20 = vector.broadcast %13 : f32 to vector<8x32xf32>
    %21 = arith.select %16, %19, %20 : vector<8x32xi1>, vector<8x32xf32>
    %22 = arith.mulf %8, %21 : vector<8x32xf32>
    %cst_7 = arith.constant dense<0.000000e+00> : vector<8xf32>
    %23 = vector.multi_reduction <add>, %22, %cst_7 [1] : vector<8x32xf32> to vector<8xf32>
    %24 = vector.shape_cast %23 : vector<8xf32> to vector<8x1xf32>
    %25 = arith.subf %12, %24 : vector<8x1xf32>
    %c8_i32_8 = arith.constant 8 : i32
    %26 = arith.muli %arg0, %c8_i32_8 : i32
    %27 = tpu.iota {dimensions = array<i32: 0>} : vector<8x1xi32>
    %28 = vector.broadcast %26 : i32 to vector<8x1xi32>
    %29 = arith.addi %28, %27 : vector<8x1xi32>
    %c20_i32 = arith.constant 20 : i32
    %30 = vector.broadcast %c20_i32 : i32 to vector<8x1xi32>
    %31 = arith.cmpi slt, %29, %30 : vector<8x1xi32>
    %cst_9 = arith.constant 0.000000e+00 : f32
    %32 = vector.broadcast %cst_9 : f32 to vector<8x1xf32>
    %33 = arith.select %31, %25, %32 : vector<8x1xi1>, vector<8x1xf32>
    %c0_10 = arith.constant 0 : index
    %c0_11 = arith.constant 0 : index
    %34 = vector.load %arg3[%c0_10, %c0_11] : memref<8x1xf32, #tpu.memory_space<vmem>>, vector<8x1xf32>
    tpu.vector_store %arg3[%c0_10, %c0_11], %33 {strides = array<i32>} : memref<8x1xf32, #tpu.memory_space<vmem>>, vector<8x1xf32>,
    return
  }
  func.func @transform_0(%arg0: i32) -> (i32, i32) {
    %c0_i32 = arith.constant 0 : i32
    %c0_i32_0 = arith.constant 0 : i32
    return %arg0, %c0_i32 : i32, i32
  }
  func.func @transform_1(%arg0: i32) -> (i32, i32) {
    %c0_i32 = arith.constant 0 : i32
    %c0_i32_0 = arith.constant 0 : i32
    %c0_i32_1 = arith.constant 0 : i32
    return %c0_i32, %c0_i32_0 : i32, i32
  }
  func.func @transform_2(%arg0: i32) -> (i32, i32) {
    %c0_i32 = arith.constant 0 : i32
    %c0_i32_0 = arith.constant 0 : i32
    return %arg0, %c0_i32 : i32, i32
  }
}

</mosaic_0001>

<llo_original>
// kernel: tpu_custom_call.1
$region0: #{tpu_custom_call.1}
  #allocation0 [shape = 'u32[]', space=smem, size = 0x4, offset = 0x4, fixed_abs, tag = 'smem constant byte address 0x4 - core index']
  #allocation1 [shape = 'u32[144,128]{1,0:T(1,128)}', space=vmem, size = 0x12000, scoped, tag = 'internal scratch']
  %s0 = inlined_call_operand.vmem [shape: f32[20,32], index: 0, kind: input, shape index: {}]
  %s1 = inlined_call_operand.vmem [shape: s32[24,1], index: 1, kind: input, shape index: {}]
  %s2 = inlined_call_operand.vmem [shape: f32[24,1], index: 2, kind: output, shape index: {}]
  %s3 = sld [smem:[#allocation0]]
  $region41: #{tpu_custom_call.1} parent=0
    _
  %s5 = ssub.s32 1, %s3
  %s6 = scalar_select 0, %s5, %s3
  loop: start=0, step=1, limit=5
  $region2: #{tpu_custom_call.1} parent=0 // loop_pre_header
    _
  $region3: #{tpu_custom_call.1} parent=0 // loop_header
    %s8 = sphi 0, %s12
    %p9 = scmp.ge.s32.totalorder %s8, 5
    %s18 = sphi 0, %s20
    %s21 = sphi 0, %s18
    %s22 = sphi 0, %s21
    %s38 = sphi 0, %s22
    %s42 = sphi 0, %s42
    %s44 = sphi 0, %s42
    %s45 = sphi 0, %s44
    %s59 = sphi 0, %s45
    %s65 = sphi 0, %s67
    %s68 = sphi 0, %s65
    %s69 = sphi 0, %s68
    %s85 = sphi 0, %s69
  $region4: #{tpu_custom_call.1} parent=0 // loop_header_branch
    %11 = sbr.rel (%p9) target = $region8
  $region5: #{tpu_custom_call.1} parent=0 // loop_body
    %s13 = ssub.s32 %s8, 1
    %s14 = ssub.s32 %s8, 2
    %s15 = sadd.s32 %s8, 1
    %s16 = ssub.s32 %s8, %s15
    %p17 = scmp.eq.s32.totalorder %s16, 0
    %s19 = sadd.s32 %s18, 1
    %s20 = scalar_select %p17, %s18, %s19
    %p23 = pneg %p17
    %p24 = scmp.eq.s32.totalorder %s8, 2
    %p25 = por %p23, %p24
    %p26 = scmp.ne.s32.totalorder %s18, %s21
    %p27 = scmp.eq.s32.totalorder %s8, 0
    %p28 = por %p26, %p27
    %p29 = scmp.ne.s32.totalorder %s18, %s21
    %p30 = scmp.eq.s32.totalorder %s13, 2
    %p31 = por %p29, %p30
    %p32 = scmp.ne.s32.totalorder %s21, %s22
    %p33 = scmp.eq.s32.totalorder %s13, 0
    %p34 = por %p32, %p33
    %p35 = scmp.ne.s32.totalorder %s21, %s22
    %p36 = scmp.eq.s32.totalorder %s14, 2
    %p37 = por %p35, %p36
    %p39 = scmp.ne.s32.totalorder %s22, %s38
    %p40 = scmp.eq.s32.totalorder %s14, 0
    %p41 = por %p39, %p40
    %s43 = sadd.s32 %s42, 1
    %p46 = scmp.eq.s32.totalorder %s8, 2
    %p47 = scmp.ne.s32.totalorder %s42, %s44
    %p48 = scmp.eq.s32.totalorder %s8, 0
    %p49 = por %p47, %p48
    %p50 = scmp.ne.s32.totalorder %s42, %s44
    %p51 = scmp.eq.s32.totalorder %s13, 2
    %p52 = por %p50, %p51
    %p53 = scmp.ne.s32.totalorder %s44, %s45
    %p54 = scmp.eq.s32.totalorder %s13, 0
    %p55 = por %p53, %p54
    %p56 = scmp.ne.s32.totalorder %s44, %s45
    %p57 = scmp.eq.s32.totalorder %s14, 2
    %p58 = por %p56, %p57
    %p60 = scmp.ne.s32.totalorder %s45, %s59
    %p61 = scmp.eq.s32.totalorder %s14, 0
    %p62 = por %p60, %p61
    %s63 = ssub.s32 %s8, %s15
    %p64 = scmp.eq.s32.totalorder %s63, 0
    %s66 = sadd.s32 %s65, 1
    %s67 = scalar_select %p64, %s65, %s66
    %p70 = pneg %p64
    %p71 = scmp.eq.s32.totalorder %s8, 2
    %p72 = por %p70, %p71
    %p73 = scmp.ne.s32.totalorder %s65, %s68
    %p74 = scmp.eq.s32.totalorder %s8, 0
    %p75 = por %p73, %p74
    %p76 = scmp.ne.s32.totalorder %s65, %s68
    %p77 = scmp.eq.s32.totalorder %s13, 2
    %p78 = por %p76, %p77
    %p79 = scmp.ne.s32.totalorder %s68, %s69
    %p80 = scmp.eq.s32.totalorder %s13, 0
    %p81 = por %p79, %p80
    %p82 = scmp.ne.s32.totalorder %s68, %s69
    %p83 = scmp.eq.s32.totalorder %s14, 2
    %p84 = por %p82, %p83
    %p86 = scmp.ne.s32.totalorder %s69, %s85
    %p87 = scmp.eq.s32.totalorder %s14, 0
    %p88 = por %p86, %p87
    %p89 = scmp.le.s32.totalorder 1, %s8
    %p90 = scmp.lt.s32.totalorder %s8, 4
    %p91 = pnand %p89, %p90
    %p92 = pneg %p91
    // Predicated region
    $region9: #{tpu_custom_call.1} parent=5 // pred_check
      _
    $region10: #{tpu_custom_call.1} parent=5 // pred_check_branch
      %94 = sbr.rel (%p91) target = $region12
    $region11: #{tpu_custom_call.1} parent=5 // pred_region
      %s95 = ssub.s32 %s8, 1
      // Predicated region
      $region13: #{tpu_custom_call.1} parent=11 // pred_check
        %p96 = pneg %p55
      $region14: #{tpu_custom_call.1} parent=11 // pred_check_branch
        %98 = sbr.rel (%p96) target = $region16
      $region15: #{tpu_custom_call.1} parent=11 // pred_region
        _
      $region16: #{tpu_custom_call.1} parent=11 // pred_fallthru
        _
    $region12: #{tpu_custom_call.1} parent=5 // pred_fallthru
      _
    %p99 = scmp.lt.s32.totalorder %s8, 3
    // Predicated region
    $region17: #{tpu_custom_call.1} parent=5 // pred_check
      %p100 = pneg %p99
    $region18: #{tpu_custom_call.1} parent=5 // pred_check_branch
      %102 = sbr.rel (%p100) target = $region20
    $region19: #{tpu_custom_call.1} parent=5 // pred_region
      // Predicated region
      $region21: #{tpu_custom_call.1} parent=19 // pred_check
        %p103 = pneg %p28
      $region22: #{tpu_custom_call.1} parent=19 // pred_check_branch
        %105 = sbr.rel (%p103) target = $region24
      $region23: #{tpu_custom_call.1} parent=19 // pred_region
        %p106 = scmp.lt.s32.totalorder %s8, 2
        %s107 = scalar_select %p106, %s8, 2
        %s108 = smul.addr %s107, 8
        %s109 = scalar_lea.vmem %s0, %s108
      $region24: #{tpu_custom_call.1} parent=19 // pred_fallthru
        _
    $region20: #{tpu_custom_call.1} parent=5 // pred_fallthru
      _
    %p110 = scmp.le.s32.totalorder 1, %s8
    %p111 = scmp.lt.s32.totalorder %s8, 4
    %p112 = pnand %p110, %p111
    %p113 = pneg %p112
    // Predicated region
    $region25: #{tpu_custom_call.1} parent=5 // pred_check
      _
    $region26: #{tpu_custom_call.1} parent=5 // pred_check_branch
      %115 = sbr.rel (%p112) target = $region28
    $region27: #{tpu_custom_call.1} parent=5 // pred_region
      %s116 = ssub.s32 %s8, 1
      %p117 = scmp.lt.s32.totalorder %s13, 2
      %s118 = scalar_select %p117, %s13, 2
      %s119 = smul.addr %s118, 8
      %s120 = scalar_lea.vmem %s0, %s119
      %p121 = pneg %p34
      %p122 = pneg %p31
      %p123 = pneg %p55
      %p124 = pneg %p52
      %p125 = pneg %p81
      %p126 = pneg %p78
      %p127 = scmp.lt.s32.totalorder %s13, 2
      %s128 = scalar_select %p127, %s13, 2
      %s129 = smul.addr %s128, 8
      %s130 = scalar_lea.vmem %s2, %s129
      %p131 = scmp.lt.s32.totalorder %s13, 2
      %s132 = scalar_select %p131, %s13, 2
      %s133 = smul.addr %s132, 8
      %s134 = scalar_lea.vmem %s0, %s133
      %p135 = scmp.lt.s32.totalorder %s13, 2
      %s136 = scalar_select %p135, %s13, 2
      %s137 = smul.addr %s136, 8
      %s138 = scalar_lea.vmem %s2, %s137
      %v139 = vld [vmem:[%s134] sm:$0xff]
      %s140 = smul.u32 %s13, 8
      %s141 = scalar_lea.vmem %s1, %s140
      %v142 = vld [vmem:[%s141] sm:$0xff]
      %vm143 = vcmask 261120
      %v144 = vsel %vm143, %v139, -inf
      %145 = vmax.xlane.f32.xlu0 %v144
      %v146 = vpop.xlane.xlu0 %145
      %v147 = vsub.f32 %v139, %v146
      %v148 = vmul.f32 %v147, 1.442695
      %v149 = vpow.pop %v148
      %v150 = vsel %vm143, %v149, 0.0
      %151 = vadd.xlane.f32.xlu0 %v150
      %v152 = vpop.xlane.xlu0 %151
      %v153 = vlog2.pop %v152
      %v154 = vmul.f32 %v153, 0.6931472
      %v155 = vlaneseq
      %v156 = vand.u32 %v155, 127
      %157 = vset.pattern.permute.xlu0 0
      %158 = vperm.xlu0 %157, %v142
      %v159 = vpop.permute.xlu0 %158
      %vm160 = vcmp.eq.s32.totalorder %v156, %v159
      %v161 = vsel %vm160, 0.903125, 0.003125
      %v162 = vmul.f32 %v147, %v161
      %v163 = vsel %vm143, %v162, 0.0
      %164 = vadd.xlane.f32.xlu0 %v163
      %v165 = vpop.xlane.xlu0 %164
      %v166 = vsub.f32 %v154, %v165
      %v167 = vlaneseq
      %v168 = vshrl.u32 %v167, 7
      %v169 = vstv %s140
      %v170 = vadd.s32 %v169, %v168
      %vm171 = vcmp.lt.s32.totalorder %v170, 20
      %v172 = vsel %vm171, %v166, 0.0
      %vm173 = vcmask 7168
      %174 = vst.msk [vmem:[%s138] sm:$0xff] %vm173, %v172
      %p175 = scmp.lt.s32.totalorder %s13, 2
      %s176 = scalar_select %p175, %s13, 2
      %s177 = smul.addr %s176, 8
      %s178 = scalar_lea.vmem %s2, %s177
      // Predicated region
      $region29: #{tpu_custom_call.1} parent=27 // pred_check
        %p179 = pneg %p78
      $region30: #{tpu_custom_call.1} parent=27 // pred_check_branch
        %181 = sbr.rel (%p179) target = $region32
      $region31: #{tpu_custom_call.1} parent=27 // pred_region
        _
      $region32: #{tpu_custom_call.1} parent=27 // pred_fallthru
        _
    $region28: #{tpu_custom_call.1} parent=5 // pred_fallthru
      _
    %p182 = scmp.le.s32.totalorder 2, %s8
    // Predicated region
    $region33: #{tpu_custom_call.1} parent=5 // pred_check
      %p183 = pneg %p182
    $region34: #{tpu_custom_call.1} parent=5 // pred_check_branch
      %185 = sbr.rel (%p183) target = $region36
    $region35: #{tpu_custom_call.1} parent=5 // pred_region
      %s186 = ssub.s32 %s8, 2
      // Predicated region
      $region37: #{tpu_custom_call.1} parent=35 // pred_check
        %p187 = pneg %p84
      $region38: #{tpu_custom_call.1} parent=35 // pred_check_branch
        %189 = sbr.rel (%p187) target = $region40
      $region39: #{tpu_custom_call.1} parent=35 // pred_region
        %p190 = scmp.lt.s32.totalorder %s14, 2
        %s191 = scalar_select %p190, %s14, 2
        %s192 = smul.addr %s191, 8
        %s193 = scalar_lea.vmem %s2, %s192
      $region40: #{tpu_custom_call.1} parent=35 // pred_fallthru
        _
    $region36: #{tpu_custom_call.1} parent=5 // pred_fallthru
      _
  $region6: #{tpu_custom_call.1} parent=0 // loop_footer
    %s12 = sadd.s32 1, %s8
  $region7: #{tpu_custom_call.1} parent=0 // loop_footer_branch
    %7 = sbr.rel target = $region3
  $region8: #{tpu_custom_call.1} parent=0 // loop_exit
    _

</llo_original>
